<compile_context>
chip_gen: v6e
topology: v6e:2x2x1
jax: 0.10.0
libtpu: 0.0.40
codegen_flags: <defaults>
</compile_context>

<pallas_src>
import functools
import math
from typing import NamedTuple

import jax
import jax.numpy as jnp
from jax.experimental import pallas as pl
from jax.experimental.pallas import tpu as pltpu


def _round_up(x, m):
    return (x + m - 1) // m * m


def _lane_round(x):
    # MXU-friendly lane padding: 256-wide tiles for v6e/v7x's 256x256 MXU once
    # the dim exceeds one native 128-lane vreg, else the minimum 128 lanes.
    return _round_up(x, 256) if x > 128 else 128


def _vmem_budget_bytes():
    # Leave headroom below physical VMEM for Mosaic internal scratch/semaphores.
    try:
        cap = int(pltpu.get_tpu_info().vmem_capacity_bytes)
    except Exception:
        cap = 64 << 20          # conservative fallback (v7x-sized)
    return (cap * 3) // 4


def _pick_row_tiling(R, cap):
    """Row tile (multiple of 16 for bf16 sublane packing), padded rows, #tiles.

    Guarantees at least 2 row tiles for moderate R so a "parallel" row axis can
    be sharded across both v7x TensorCores.
    """
    min_rt = 2 if R > 32 else 1
    rt = max(min_rt, -(-R // cap))
    tr = _round_up(-(-R // rt), 16)
    rp = tr * rt
    return tr, rp, rt


class BoxHeadMeta(NamedTuple):
    mode: str        # "resident" (w6 fully VMEM-resident) or "stream" (K-tiled)
    D: int           # fc6 input dim  (P*P*C)
    Dp: int          # padded input dim (== D in resident mode)
    H: int           # representation size (fc6/fc7 out)
    Hp: int          # lane-padded H
    n_pred: int      # num_classes + 4*num_classes
    Np: int          # lane-padded n_pred
    TK: int          # K tile (stream mode)
    vmem_budget: int


# -----------------------------------------------------------------------------
# Weight preparation (runs ONCE, outside the jitted per-call path): pad/cast to
# bf16, concatenate cls|bbox predictor into one lane-dense slab, pick the mode.
# -----------------------------------------------------------------------------
def prepare_box_head_params(params, num_classes, force_mode=None):
    D, H = params["w6"].shape
    n_pred = num_classes + 4 * num_classes
    Hp = _lane_round(H)
    Np = _lane_round(n_pred)

    budget = _vmem_budget_bytes()
    # Inputs (even constant-index ones) are double-buffered by the BlockSpec
    # pipeline -> count weights twice.  Activation allowance assumes the
    # largest (256-row) tile.
    weight_vmem = 2 * ((D * Hp + Hp * Hp + Hp * Np) * 2 + (2 * Hp + Np) * 4)
    act_allow = 2 * 256 * D * 2 + 2 * 256 * (Hp + Np) * 2 + (8 << 20)
    mode = "resident" if (weight_vmem + act_allow) <= budget else "stream"
    if force_mode is not None:
        mode = force_mode

    TK = min(1024, _round_up(D, 128))
    Dp = _round_up(D, TK) if mode == "stream" else D

    f32, bf16 = jnp.float32, jnp.bfloat16
    w6 = jnp.zeros((Dp, Hp), bf16).at[:D, :H].set(params["w6"].astype(bf16))
    b6 = jnp.zeros((1, Hp), f32).at[:, :H].set(params["b6"].astype(f32))
    w7 = jnp.zeros((Hp, Hp), bf16).at[:H, :H].set(params["w7"].astype(bf16))
    b7 = jnp.zeros((1, Hp), f32).at[:, :H].set(params["b7"].astype(f32))
    wcb_ = jnp.concatenate([params["wc"], params["wb"]], axis=1)      # (H, 5C)
    bcb_ = jnp.concatenate([params["bc"], params["bb"]], axis=1)      # (1, 5C)
    wcb = jnp.zeros((Hp, Np), bf16).at[:H, :n_pred].set(wcb_.astype(bf16))
    bcb = jnp.zeros((1, Np), f32).at[:, :n_pred].set(bcb_.astype(f32))

    weights = {"w6": w6, "b6": b6, "w7": w7, "b7": b7, "wcb": wcb, "bcb": bcb}
    meta = BoxHeadMeta(mode=mode, D=int(D), Dp=int(Dp), H=int(H), Hp=int(Hp),
                       n_pred=int(n_pred), Np=int(Np), TK=int(TK),
                       vmem_budget=int(budget))
    return weights, meta


# -----------------------------------------------------------------------------
# Pallas kernels
# -----------------------------------------------------------------------------
def _box_head_resident_kernel(pooled_ref, w6_ref, b6_ref, w7_ref, b7_ref,
                              wcb_ref, bcb_ref, x_ref, pred_ref):
    # Full fc6 in one MXU pass (w6 is VMEM-resident via constant index map).
    h6 = jnp.dot(pooled_ref[...], w6_ref[...], preferred_element_type=jnp.float32)
    h6 = jnp.maximum(h6 + b6_ref[...], 0.0)                       # ReLU (VPU)
    h7 = jnp.dot(h6.astype(w7_ref.dtype), w7_ref[...],
                 preferred_element_type=jnp.float32) + b7_ref[...]
    h7 = jnp.maximum(h7, 0.0)                                     # ReLU (VPU)
    x_ref[...] = h7.astype(x_ref.dtype)
    pred = jnp.dot(h7.astype(wcb_ref.dtype), wcb_ref[...],
                   preferred_element_type=jnp.float32) + bcb_ref[...]
    pred_ref[...] = pred.astype(pred_ref.dtype)


def _box_head_stream_kernel(pooled_ref, w6_ref, b6_ref, w7_ref, b7_ref,
                            wcb_ref, bcb_ref, x_ref, pred_ref, acc_ref):
    k = pl.program_id(1)

    @pl.when(k == 0)
    def _():
        acc_ref[...] = jnp.zeros_like(acc_ref)

    # fc6 partial product for this K tile (bf16 inputs, f32 accumulate on MXU)
    acc_ref[...] += jnp.dot(pooled_ref[...], w6_ref[...],
                            preferred_element_type=jnp.float32)

    @pl.when(k == pl.num_programs(1) - 1)
    def _():
        h6 = jnp.maximum(acc_ref[...] + b6_ref[...], 0.0)
        h7 = jnp.dot(h6.astype(w7_ref.dtype), w7_ref[...],
                     preferred_element_type=jnp.float32) + b7_ref[...]
        h7 = jnp.maximum(h7, 0.0)
        x_ref[...] = h7.astype(x_ref.dtype)
        pred_ref[...] = (jnp.dot(h7.astype(wcb_ref.dtype), wcb_ref[...],
                                 preferred_element_type=jnp.float32)
                         + bcb_ref[...]).astype(pred_ref.dtype)


# -----------------------------------------------------------------------------
# fc6 -> ReLU -> fc7 -> ReLU -> fused predictor GEMM
# -----------------------------------------------------------------------------
def box_head_pallas(pooled, weights, meta, num_classes):
    """pooled: (R, D) bf16; returns x (R,H) bf16, logits (R,C) bf16, bbox (R,4C) bf16."""
    R, D = pooled.shape
    assert D == meta.D, (D, meta.D)
    bf16, f32 = jnp.bfloat16, jnp.float32

    resident = meta.mode == "resident"
    TR, Rp, RT = _pick_row_tiling(R, cap=(256 if resident else 512))

    # Row-pad only (and column-pad only on the stream fallback).  Padded rows
    # are zeros -> their outputs are garbage-free and sliced off below.
    pooled = pooled.astype(bf16)
    pad_r = Rp - R
    pad_c = (meta.Dp - D) if not resident else 0
    if pad_r or pad_c:
        pooled = jnp.pad(pooled, ((0, pad_r), (0, pad_c)))

    Hp, Np = meta.Hp, meta.Np
    out_shapes = (jax.ShapeDtypeStruct((Rp, Hp), bf16),
                  jax.ShapeDtypeStruct((Rp, Np), bf16))

    if resident:
        grid = (RT,)
        in_specs = [
            pl.BlockSpec((TR, D), lambda i: (i, 0)),      # pooled rows (stream)
            pl.BlockSpec((D, Hp), lambda i: (0, 0)),      # w6  (VMEM-resident)
            pl.BlockSpec((1, Hp), lambda i: (0, 0)),      # b6
            pl.BlockSpec((Hp, Hp), lambda i: (0, 0)),     # w7  (resident)
            pl.BlockSpec((1, Hp), lambda i: (0, 0)),      # b7
            pl.BlockSpec((Hp, Np), lambda i: (0, 0)),     # wc|wb fused (resident)
            pl.BlockSpec((1, Np), lambda i: (0, 0)),      # bc|bb fused
        ]
        out_specs = [pl.BlockSpec((TR, Hp), lambda i: (i, 0)),
                     pl.BlockSpec((TR, Np), lambda i: (i, 0))]
        scratch_shapes = []
        kernel = _box_head_resident_kernel
        dim_sem = ("parallel",)
        flops = 2 * Rp * (D * Hp + Hp * Hp + Hp * Np)
        bytes_accessed = (Rp * D * 2                                  # pooled
                          + (D * Hp + Hp * Hp + Hp * Np) * 2          # weights x1
                          + (2 * Hp + Np) * 4                         # biases
                          + Rp * (Hp + Np) * 2)                       # bf16 outputs
        vmem_est = (2 * TR * D * 2
                    + 2 * (D * Hp + Hp * Hp + Hp * Np) * 2
                    + 2 * (2 * Hp + Np) * 4
                    + 2 * TR * (Hp + Np) * 2)
    else:
        TK, Dp = meta.TK, meta.Dp
        KT = Dp // TK
        grid = (RT, KT)
        in_specs = [
            pl.BlockSpec((TR, TK), lambda i, k: (i, k)),   # pooled tile (streams)
            pl.BlockSpec((TK, Hp), lambda i, k: (k, 0)),   # w6 K-slab (streams)
            pl.BlockSpec((1, Hp), lambda i, k: (0, 0)),    # b6 (resident)
            pl.BlockSpec((Hp, Hp), lambda i, k: (0, 0)),   # w7 (resident)
            pl.BlockSpec((1, Hp), lambda i, k: (0, 0)),    # b7 (resident)
            pl.BlockSpec((Hp, Np), lambda i, k: (0, 0)),   # wc|wb fused (resident)
            pl.BlockSpec((1, Np), lambda i, k: (0, 0)),    # bc|bb fused (resident)
        ]
        out_specs = [pl.BlockSpec((TR, Hp), lambda i, k: (i, 0)),
                     pl.BlockSpec((TR, Np), lambda i, k: (i, 0))]
        scratch_shapes = [pltpu.VMEM((TR, Hp), f32)]       # fc6 accumulator
        kernel = _box_head_stream_kernel
        dim_sem = ("parallel", "arbitrary")
        flops = 2 * Rp * (Dp * Hp + Hp * Hp + Hp * Np)
        bytes_accessed = (Rp * Dp * 2                                 # pooled
                          + RT * Dp * Hp * 2                          # w6 re-read RT times
                          + (Hp * Hp + Hp * Np) * 2                   # resident weights x1
                          + (2 * Hp + Np) * 4                         # biases
                          + Rp * (Hp + Np) * 2)                       # bf16 outputs
        vmem_est = (2 * TR * TK * 2
                    + 2 * (TK * Hp + Hp * Hp + Hp * Np) * 2
                    + 2 * (2 * Hp + Np) * 4
                    + 2 * TR * (Hp + Np) * 2
                    + TR * Hp * 4)

    vmem_limit = int(min(max(vmem_est + (4 << 20), 16 << 20), meta.vmem_budget))
    cost = pl.CostEstimate(flops=int(flops), transcendentals=0,
                           bytes_accessed=int(bytes_accessed))

    x_p, pred_p = pl.pallas_call(
        kernel,
        out_shape=out_shapes,
        grid_spec=pltpu.PrefetchScalarGridSpec(
            num_scalar_prefetch=0,
            grid=grid,
            in_specs=in_specs,
            out_specs=out_specs,
            scratch_shapes=scratch_shapes),
        compiler_params=pltpu.CompilerParams(
            dimension_semantics=dim_sem,
            vmem_limit_bytes=vmem_limit),
        cost_estimate=cost,
    )(pooled, weights["w6"], weights["b6"], weights["w7"], weights["b7"],
      weights["wcb"], weights["bcb"])

    x = x_p[:R, :meta.H]
    class_logits = pred_p[:R, :num_classes]
    box_regression = pred_p[:R, num_classes:meta.n_pred]
    return x, class_logits, box_regression


# -----------------------------------------------------------------------------
# ROIAlign (NHWC, sampling_ratio=2, legacy/aligned=False convention) — JAX glue.
# Emits a lane-dense bf16 (R, P*P*C) matrix directly for the Pallas GEMM.
# TODO(synk): multi-level FPN pooler (level assignment) not implemented —
#             single feature level only.
# TODO(synk): adaptive sampling_ratio (=0 in the config) not implemented.
# -----------------------------------------------------------------------------
def roi_align_nhwc(features, rois, pooled_size, spatial_scale=1.0,
                   sampling_ratio=2, out_dtype=jnp.bfloat16):
    # features: (N, H, W, C) f32; rois: (R, 5) = [batch_idx, x1, y1, x2, y2]
    _, Hf, Wf, _ = features.shape
    P, sr = pooled_size, sampling_ratio
    S = P * sr

    def one_roi(roi):
        b = roi[0].astype(jnp.int32)
        x1 = roi[1] * spatial_scale
        y1 = roi[2] * spatial_scale
        x2 = roi[3] * spatial_scale
        y2 = roi[4] * spatial_scale
        roi_w = jnp.maximum(x2 - x1, 1.0)
        roi_h = jnp.maximum(y2 - y1, 1.0)
        bin_w = roi_w / P
        bin_h = roi_h / P
        # sr x sr sample points per bin, centered at (p + (i+0.5)/sr) bin units
        off = (jnp.arange(S, dtype=jnp.float32) + 0.5) / sr        # (S,)
        ys = y1 + bin_h * off
        xs = x1 + bin_w * off

        fmap = features[b]                                         # (Hf, Wf, C)

        # out-of-image sample points contribute zero (reference semantics)
        vy = (ys >= -1.0) & (ys <= float(Hf))
        vx = (xs >= -1.0) & (xs <= float(Wf))

        ysc = jnp.clip(ys, 0.0, Hf - 1.0)
        xsc = jnp.clip(xs, 0.0, Wf - 1.0)
        y0 = jnp.floor(ysc)
        x0 = jnp.floor(xsc)
        ly = ysc - y0
        lx = xsc - x0
        y0i = y0.astype(jnp.int32)
        x0i = x0.astype(jnp.int32)
        y1i = jnp.minimum(y0i + 1, Hf - 1)
        x1i = jnp.minimum(x0i + 1, Wf - 1)

        f00 = fmap[y0i[:, None], x0i[None, :], :]                  # (S, S, C)
        f01 = fmap[y0i[:, None], x1i[None, :], :]
        f10 = fmap[y1i[:, None], x0i[None, :], :]
        f11 = fmap[y1i[:, None], x1i[None, :], :]
        wy = ly[:, None, None]
        wx = lx[None, :, None]
        val = (f00 * (1 - wy) * (1 - wx) + f01 * (1 - wy) * wx +
               f10 * wy * (1 - wx) + f11 * wy * wx)                # (S, S, C)
        mask = (vy[:, None] & vx[None, :]).astype(val.dtype)[:, :, None]
        val = val * mask
        # average the sr x sr sample points of each output bin
        return val.reshape(P, sr, P, sr, -1).mean(axis=(1, 3))     # (P, P, C)

    pooled = jax.vmap(one_roi)(rois)                               # (R, P, P, C)
    return pooled.reshape(rois.shape[0], -1).astype(out_dtype)     # (R, P*P*C)


# -----------------------------------------------------------------------------
# Post-processor glue: softmax scores + BoxCoder decoding.
# TODO(synk): per-class NMS / score thresholding is data-dependent control flow
#             with no clean Pallas equivalent; boxes are returned unsuppressed.
# -----------------------------------------------------------------------------
_BBOX_XFORM_CLIP = math.log(1000.0 / 16.0)
_BBOX_REG_WEIGHTS = (10.0, 10.0, 5.0, 5.0)   # maskrcnn-benchmark default


def decode_boxes(rois_xyxy, box_regression, num_classes):
    to_remove = 1.0                                   # legacy BoxCoder convention
    widths = rois_xyxy[:, 2] - rois_xyxy[:, 0] + to_remove
    heights = rois_xyxy[:, 3] - rois_xyxy[:, 1] + to_remove
    ctr_x = rois_xyxy[:, 0] + 0.5 * widths
    ctr_y = rois_xyxy[:, 1] + 0.5 * heights
    deltas = box_regression.reshape(-1, num_classes, 4)
    wx, wy, ww, wh = _BBOX_REG_WEIGHTS
    dx = deltas[..., 0] / wx
    dy = deltas[..., 1] / wy
    dw = jnp.minimum(deltas[..., 2] / ww, _BBOX_XFORM_CLIP)   # prevent exp overflow
    dh = jnp.minimum(deltas[..., 3] / wh, _BBOX_XFORM_CLIP)
    pred_ctr_x = dx * widths[:, None] + ctr_x[:, None]
    pred_ctr_y = dy * heights[:, None] + ctr_y[:, None]
    pred_w = jnp.exp(dw) * widths[:, None]
    pred_h = jnp.exp(dh) * heights[:, None]
    return jnp.stack([pred_ctr_x - 0.5 * pred_w,
                      pred_ctr_y - 0.5 * pred_h,
                      pred_ctr_x + 0.5 * pred_w - 1.0,
                      pred_ctr_y + 0.5 * pred_h - 1.0], axis=-1)


# -----------------------------------------------------------------------------
# Full ROIBoxHead forward (inference path, targets=None).
# TODO(synk): loss_evaluator (proposal subsampling, CE + smooth-L1) requires
#             ground-truth BoxLists; not translatable here -> empty losses dict.
# -----------------------------------------------------------------------------
@functools.partial(jax.jit, static_argnames=("meta", "pooled_size", "num_classes",
                                             "spatial_scale", "sampling_ratio"))
def roi_box_head_forward(features_nhwc, proposals, weights, meta,
                         pooled_size, num_classes,
                         spatial_scale=1.0, sampling_ratio=2):
    # features_nhwc: (N, H, W, C); proposals: (R, 5) = [batch_idx, x1, y1, x2, y2]
    pooled = roi_align_nhwc(features_nhwc, proposals, pooled_size,
                            spatial_scale, sampling_ratio)          # (R, P*P*C) bf16

    x, class_logits, box_regression = box_head_pallas(pooled, weights, meta, num_classes)

    scores = jax.nn.softmax(class_logits.astype(jnp.float32), axis=-1)
    decoded = decode_boxes(proposals[:, 1:], box_regression.astype(jnp.float32),
                           num_classes)
    proposals_nms = (decoded, scores)

    losses = {}  # inference path
    return x, proposals, proposals_nms, losses, class_logits, box_regression


def make_params(key, in_dim, rep_size, num_classes):
    # NOTE: in_dim is the NHWC flatten order (P*P*C). Real PyTorch fc6 weights
    # (flattened in C,P,P order) would need a column permutation before use.
    ks = jax.random.split(key, 4)
    s = 0.02
    return {
        "w6": s * jax.random.normal(ks[0], (in_dim, rep_size), jnp.float32),
        "b6": jnp.zeros((1, rep_size), jnp.float32),
        "w7": s * jax.random.normal(ks[1], (rep_size, rep_size), jnp.float32),
        "b7": jnp.zeros((1, rep_size), jnp.float32),
        "wc": s * jax.random.normal(ks[2], (rep_size, num_classes), jnp.float32),
        "bc": jnp.zeros((1, num_classes), jnp.float32),
        "wb": s * jax.random.normal(ks[3], (rep_size, num_classes * 4), jnp.float32),
        "bb": jnp.zeros((1, num_classes * 4), jnp.float32),
    }


if __name__ == "__main__":
    key = jax.random.PRNGKey(0)
    k_feat, k_box, k_param, k_pool, k_param2 = jax.random.split(key, 5)

    # ------------------------------------------------------------------ Test 1
    # End-to-end ROIBoxHead forward at small shapes (exercises resident mode).
    N, C, Hf, Wf = 2, 4, 16, 16          # feature map (NHWC below)
    P = 4                                # pooled resolution (ROIAlign output)
    REP = 32                             # MLP representation size (fc6/fc7)
    NUM_CLASSES = 5
    R = 8                                # total number of proposals

    features = jax.random.normal(k_feat, (N, Hf, Wf, C), jnp.float32)   # NHWC

    # proposals: (R, 5) = [batch_idx, x1, y1, x2, y2] in feature-map coords
    bidx = (jnp.arange(R) % N).astype(jnp.float32)[:, None]
    xy1 = jax.random.uniform(k_box, (R, 2), minval=0.0, maxval=Hf / 2.0)
    wh = jax.random.uniform(jax.random.fold_in(k_box, 1), (R, 2),
                            minval=2.0, maxval=Hf / 2.0)
    xy2 = jnp.minimum(xy1 + wh, float(Hf - 1))
    proposals = jnp.concatenate([bidx, xy1, xy2], axis=1)

    params = make_params(k_param, P * P * C, REP, NUM_CLASSES)
    weights, meta = prepare_box_head_params(params, NUM_CLASSES)   # once, outside jit

    x, props, props_nms, losses, logits, bbox_reg = roi_box_head_forward(
        features, proposals, weights, meta, pooled_size=P, num_classes=NUM_CLASSES)

    jax.block_until_ready((x, logits, bbox_reg, props_nms))
    assert x.shape == (R, REP)
    assert logits.shape == (R, NUM_CLASSES)
    assert bbox_reg.shape == (R, NUM_CLASSES * 4)
    assert bool(jnp.all(jnp.isfinite(x.astype(jnp.float32))))
    assert bool(jnp.all(jnp.isfinite(bbox_reg.astype(jnp.float32))))
    assert bool(jnp.all(jnp.isfinite(props_nms[0])))

    # ------------------------------------------------------------------ Test 2
    # Both Pallas paths (resident & K-tiled stream) vs a pure-JAX reference.
    R2, D2, REP2, NC2 = 200, 2304, 256, 9
    pooled2 = (0.1 * jax.random.normal(k_pool, (R2, D2), jnp.float32)).astype(jnp.bfloat16)
    params2 = make_params(k_param2, D2, REP2, NC2)

    hi = functools.partial(jnp.dot, precision=jax.lax.Precision.HIGHEST)

    def ref_head(pooled_b, p):
        cast = lambda a: a.astype(jnp.bfloat16).astype(jnp.float32)
        po = pooled_b.astype(jnp.float32)
        h6 = jnp.maximum(hi(po, cast(p["w6"])) + p["b6"], 0.0)
        h7 = jnp.maximum(hi(h6, cast(p["w7"])) + p["b7"], 0.0)
        logits = hi(h7, cast(p["wc"])) + p["bc"]
        bbox = hi(h7, cast(p["wb"])) + p["bb"]
        return h7, logits, bbox

    x_ref, lg_ref, bb_ref = ref_head(pooled2, params2)

    box_head_jit = jax.jit(box_head_pallas, static_argnames=("meta", "num_classes"))

    def _assert_close(got, want, tag):
        got = got.astype(jnp.float32)
        err = float(jnp.max(jnp.abs(got - want)))
        scale = float(jnp.max(jnp.abs(want))) + 1e-3
        assert err <= 0.05 * scale + 3e-2, (tag, err, scale)

    for mode in ("resident", "stream"):
        w_m, meta_m = prepare_box_head_params(params2, NC2, force_mode=mode)
        x_m, lg_m, bb_m = box_head_jit(pooled2, w_m, meta_m, NC2)
        jax.block_until_ready((x_m, lg_m, bb_m))
        _assert_close(x_m, x_ref, mode + "/x")
        _assert_close(lg_m, lg_ref, mode + "/logits")
        _assert_close(bb_m, bb_ref, mode + "/bbox")

    print("KERNEL_OK")
</pallas_src>

<mosaic_0001>
module attributes {stable_mosaic.version = 11 : i64} {
  func.func @_box_head_resident_kernel(%arg0: i32, %arg1: memref<16x64xbf16, #tpu.memory_space<vmem>>, %arg2: memref<64x128xbf16, #tpu.memory_space<vmem>>, %arg3: memref<1x128xf32, #tpu.memory_space<vmem>>, %arg4: memref<128x128xbf16, #tpu.memory_space<vmem>>, %arg5: memref<1x128xf32, #tpu.memory_space<vmem>>, %arg6: memref<128x128xbf16, #tpu.memory_space<vmem>>, %arg7: memref<1x128xf32, #tpu.memory_space<vmem>>, %arg8: memref<16x128xbf16, #tpu.memory_space<vmem>>, %arg9: memref<16x128xbf16, #tpu.memory_space<vmem>>) attributes {dimension_semantics = [#tpu.dimension_semantics<parallel>], iteration_bounds = array<i64: 1>, scalar_prefetch = 0 : i64, scratch_operands = 0 : i64, tpu.core_type = #tpu.core_type<tc>, window_params = [{transform_indices = @transform_0, window_bounds = array<i64: 16, 64>}, {pipeline_mode = #tpu.pipeline_mode<synchronous>, transform_indices = @transform_1, window_bounds = array<i64: 64, 128>}, {pipeline_mode = #tpu.pipeline_mode<synchronous>, transform_indices = @transform_2, window_bounds = array<i64: 1, 128>}, {pipeline_mode = #tpu.pipeline_mode<synchronous>, transform_indices = @transform_3, window_bounds = array<i64: 128, 128>}, {pipeline_mode = #tpu.pipeline_mode<synchronous>, transform_indices = @transform_4, window_bounds = array<i64: 1, 128>}, {pipeline_mode = #tpu.pipeline_mode<synchronous>, transform_indices = @transform_5, window_bounds = array<i64: 128, 128>}, {pipeline_mode = #tpu.pipeline_mode<synchronous>, transform_indices = @transform_6, window_bounds = array<i64: 1, 128>}, {transform_indices = @transform_7, window_bounds = array<i64: 16, 128>}, {transform_indices = @transform_8, window_bounds = array<i64: 16, 128>}]} {
    %c0 = arith.constant 0 : index
    %c0_0 = arith.constant 0 : index
    %0 = vector.load %arg1[%c0, %c0_0] : memref<16x64xbf16, #tpu.memory_space<vmem>>, vector<16x64xbf16>
    %c0_1 = arith.constant 0 : index
    %c0_2 = arith.constant 0 : index
    %1 = vector.load %arg2[%c0_1, %c0_2] : memref<64x128xbf16, #tpu.memory_space<vmem>>, vector<64x128xbf16>
    %cst = arith.constant dense<0.000000e+00> : vector<16x128xf32>
    %2 = tpu.matmul %0, %1, %cst {dimension_numbers = #tpu.dot_dimension_numbers<[1], [0], [0], [1], [0, 0, 1, 1], [], []>} : vector<16x64xbf16>, vector<64x128xbf16>, vector<16x128xf32> -> vector<16x128xf32>
    %c0_3 = arith.constant 0 : index
    %c0_4 = arith.constant 0 : index
    %3 = vector.load %arg3[%c0_3, %c0_4] : memref<1x128xf32, #tpu.memory_space<vmem>>, vector<1x128xf32>
    %4 = vector.broadcast %3 : vector<1x128xf32> to vector<16x128xf32>
    %5 = arith.addf %2, %4 : vector<16x128xf32>
    %cst_5 = arith.constant 0.000000e+00 : f32
    %6 = vector.broadcast %cst_5 : f32 to vector<16x128xf32>
    %7 = arith.maximumf %5, %6 : vector<16x128xf32>
    %8 = arith.truncf %7 : vector<16x128xf32> to vector<16x128xbf16>
    %c0_6 = arith.constant 0 : index
    %c0_7 = arith.constant 0 : index
    %9 = vector.load %arg4[%c0_6, %c0_7] : memref<128x128xbf16, #tpu.memory_space<vmem>>, vector<128x128xbf16>
    %cst_8 = arith.constant dense<0.000000e+00> : vector<16x128xf32>
    %10 = tpu.matmul %8, %9, %cst_8 {dimension_numbers = #tpu.dot_dimension_numbers<[1], [0], [0], [1], [0, 0, 1, 1], [], []>} : vector<16x128xbf16>, vector<128x128xbf16>, vector<16x128xf32> -> vector<16x128xf32>
    %c0_9 = arith.constant 0 : index
    %c0_10 = arith.constant 0 : index
    %11 = vector.load %arg5[%c0_9, %c0_10] : memref<1x128xf32, #tpu.memory_space<vmem>>, vector<1x128xf32>
    %12 = vector.broadcast %11 : vector<1x128xf32> to vector<16x128xf32>
    %13 = arith.addf %10, %12 : vector<16x128xf32>
    %cst_11 = arith.constant 0.000000e+00 : f32
    %14 = vector.broadcast %cst_11 : f32 to vector<16x128xf32>
    %15 = arith.maximumf %13, %14 : vector<16x128xf32>
    %16 = arith.truncf %15 : vector<16x128xf32> to vector<16x128xbf16>
    %c0_12 = arith.constant 0 : index
    %c0_13 = arith.constant 0 : index
    %17 = vector.load %arg8[%c0_12, %c0_13] : memref<16x128xbf16, #tpu.memory_space<vmem>>, vector<16x128xbf16>
    tpu.vector_store %arg8[%c0_12, %c0_13], %16 {strides = array<i32>} : memref<16x128xbf16, #tpu.memory_space<vmem>>, vector<16x128xbf16>,
    %18 = arith.truncf %15 : vector<16x128xf32> to vector<16x128xbf16>
    %c0_14 = arith.constant 0 : index
    %c0_15 = arith.constant 0 : index
    %19 = vector.load %arg6[%c0_14, %c0_15] : memref<128x128xbf16, #tpu.memory_space<vmem>>, vector<128x128xbf16>
    %cst_16 = arith.constant dense<0.000000e+00> : vector<16x128xf32>
    %20 = tpu.matmul %18, %19, %cst_16 {dimension_numbers = #tpu.dot_dimension_numbers<[1], [0], [0], [1], [0, 0, 1, 1], [], []>} : vector<16x128xbf16>, vector<128x128xbf16>, vector<16x128xf32> -> vector<16x128xf32>
    %c0_17 = arith.constant 0 : index
    %c0_18 = arith.constant 0 : index
    %21 = vector.load %arg7[%c0_17, %c0_18] : memref<1x128xf32, #tpu.memory_space<vmem>>, vector<1x128xf32>
    %22 = vector.broadcast %21 : vector<1x128xf32> to vector<16x128xf32>
    %23 = arith.addf %20, %22 : vector<16x128xf32>
    %24 = arith.truncf %23 : vector<16x128xf32> to vector<16x128xbf16>
    %c0_19 = arith.constant 0 : index
    %c0_20 = arith.constant 0 : index
    %25 = vector.load %arg9[%c0_19, %c0_20] : memref<16x128xbf16, #tpu.memory_space<vmem>>, vector<16x128xbf16>
    tpu.vector_store %arg9[%c0_19, %c0_20], %24 {strides = array<i32>} : memref<16x128xbf16, #tpu.memory_space<vmem>>, vector<16x128xbf16>,
    return
  }
  func.func @transform_0(%arg0: i32) -> (i32, i32) {
    %c0_i32 = arith.constant 0 : i32
    %c0_i32_0 = arith.constant 0 : i32
    return %arg0, %c0_i32 : i32, i32
  }
  func.func @transform_1(%arg0: i32) -> (i32, i32) {
    %c0_i32 = arith.constant 0 : i32
    %c0_i32_0 = arith.constant 0 : i32
    %c0_i32_1 = arith.constant 0 : i32
    return %c0_i32, %c0_i32_0 : i32, i32
  }
  func.func @transform_2(%arg0: i32) -> (i32, i32) {
    %c0_i32 = arith.constant 0 : i32
    %c0_i32_0 = arith.constant 0 : i32
    %c0_i32_1 = arith.constant 0 : i32
    return %c0_i32, %c0_i32_0 : i32, i32
  }
  func.func @transform_3(%arg0: i32) -> (i32, i32) {
    %c0_i32 = arith.constant 0 : i32
    %c0_i32_0 = arith.constant 0 : i32
    %c0_i32_1 = arith.constant 0 : i32
    return %c0_i32, %c0_i32_0 : i32, i32
  }
  func.func @transform_4(%arg0: i32) -> (i32, i32) {
    %c0_i32 = arith.constant 0 : i32
    %c0_i32_0 = arith.constant 0 : i32
    %c0_i32_1 = arith.constant 0 : i32
    return %c0_i32, %c0_i32_0 : i32, i32
  }
  func.func @transform_5(%arg0: i32) -> (i32, i32) {
    %c0_i32 = arith.constant 0 : i32
    %c0_i32_0 = arith.constant 0 : i32
    %c0_i32_1 = arith.constant 0 : i32
    return %c0_i32, %c0_i32_0 : i32, i32
  }
  func.func @transform_6(%arg0: i32) -> (i32, i32) {
    %c0_i32 = arith.constant 0 : i32
    %c0_i32_0 = arith.constant 0 : i32
    %c0_i32_1 = arith.constant 0 : i32
    return %c0_i32, %c0_i32_0 : i32, i32
  }
  func.func @transform_7(%arg0: i32) -> (i32, i32) {
    %c0_i32 = arith.constant 0 : i32
    %c0_i32_0 = arith.constant 0 : i32
    return %arg0, %c0_i32 : i32, i32
  }
  func.func @transform_8(%arg0: i32) -> (i32, i32) {
    %c0_i32 = arith.constant 0 : i32
    %c0_i32_0 = arith.constant 0 : i32
    return %arg0, %c0_i32 : i32, i32
  }
}

</mosaic_0001>

<llo_original>
// kernel: roi_box_head_forward.1
$region0: #{roi_box_head_forward.1}
  #allocation0 [shape = 'u32[]', space=smem, size = 0x4, offset = 0x4, fixed_abs, tag = 'smem constant byte address 0x4 - core index']
  #allocation1 [shape = 'u32[144,128]{1,0:T(1,128)}', space=vmem, size = 0x12000, scoped, tag = 'internal scratch']
  %s0 = inlined_call_operand.vmem [shape: bf16[16,64], index: 0, kind: input, shape index: {}]
  %s1 = inlined_call_operand.vmem [shape: bf16[64,128], index: 1, kind: input, shape index: {}]
  %s2 = inlined_call_operand.vmem [shape: f32[1,128], index: 2, kind: input, shape index: {}]
  %s3 = inlined_call_operand.vmem [shape: bf16[128,128], index: 3, kind: input, shape index: {}]
  %s4 = inlined_call_operand.vmem [shape: f32[1,128], index: 4, kind: input, shape index: {}]
  %s5 = inlined_call_operand.vmem [shape: bf16[128,128], index: 5, kind: input, shape index: {}]
  %s6 = inlined_call_operand.vmem [shape: f32[1,128], index: 6, kind: input, shape index: {}]
  %s7 = inlined_call_operand.vmem [shape: bf16[16,128], index: 7, kind: output, shape index: {0}]
  %s8 = inlined_call_operand.vmem [shape: bf16[16,128], index: 8, kind: output, shape index: {1}]
  %9 = xla_tuple %s7, %s8
  %s10 = sld [smem:[#allocation0]]
  $region46: #{roi_box_head_forward.1} parent=0
    _
  %s12 = ssub.s32 1, %s10
  %s13 = scalar_select 0, %s12, %s10
  // Predicated region
  $region2: #{roi_box_head_forward.1} parent=0 // pred_check
    _
  $region3: #{roi_box_head_forward.1} parent=0 // pred_check_branch
    %15 = sbr.rel (0) target = $region5
  $region4: #{roi_box_head_forward.1} parent=0 // pred_region
    _
  $region5: #{roi_box_head_forward.1} parent=0 // pred_fallthru
    _
  // Predicated region
  $region6: #{roi_box_head_forward.1} parent=0 // pred_check
    _
  $region7: #{roi_box_head_forward.1} parent=0 // pred_check_branch
    %17 = sbr.rel (0) target = $region9
  $region8: #{roi_box_head_forward.1} parent=0 // pred_region
    _
  $region9: #{roi_box_head_forward.1} parent=0 // pred_fallthru
    _
  // Predicated region
  $region10: #{roi_box_head_forward.1} parent=0 // pred_check
    _
  $region11: #{roi_box_head_forward.1} parent=0 // pred_check_branch
    %19 = sbr.rel (0) target = $region13
  $region12: #{roi_box_head_forward.1} parent=0 // pred_region
    _
  $region13: #{roi_box_head_forward.1} parent=0 // pred_fallthru
    _
  // Predicated region
  $region14: #{roi_box_head_forward.1} parent=0 // pred_check
    _
  $region15: #{roi_box_head_forward.1} parent=0 // pred_check_branch
    %21 = sbr.rel (0) target = $region17
  $region16: #{roi_box_head_forward.1} parent=0 // pred_region
    _
  $region17: #{roi_box_head_forward.1} parent=0 // pred_fallthru
    _
  // Predicated region
  $region18: #{roi_box_head_forward.1} parent=0 // pred_check
    _
  $region19: #{roi_box_head_forward.1} parent=0 // pred_check_branch
    %23 = sbr.rel (0) target = $region21
  $region20: #{roi_box_head_forward.1} parent=0 // pred_region
    _
  $region21: #{roi_box_head_forward.1} parent=0 // pred_fallthru
    _
  // Predicated region
  $region22: #{roi_box_head_forward.1} parent=0 // pred_check
    _
  $region23: #{roi_box_head_forward.1} parent=0 // pred_check_branch
    %25 = sbr.rel (0) target = $region25
  $region24: #{roi_box_head_forward.1} parent=0 // pred_region
    _
  $region25: #{roi_box_head_forward.1} parent=0 // pred_fallthru
    _
  // Predicated region
  $region26: #{roi_box_head_forward.1} parent=0 // pred_check
    _
  $region27: #{roi_box_head_forward.1} parent=0 // pred_check_branch
    %27 = sbr.rel (0) target = $region29
  $region28: #{roi_box_head_forward.1} parent=0 // pred_region
    _
  $region29: #{roi_box_head_forward.1} parent=0 // pred_fallthru
    _
  %v29 = vld [vmem:[%s0] sm:$0xf]
  %v30 = vld [vmem:[%s0 + $0x4] sm:$0xf]
  %v31 = vld [vmem:[%s1] sm:$0xf]
  %v32 = vld [vmem:[%s1 + $0x4] sm:$0xf]
  %v33 = vld [vmem:[%s1 + $0x8] sm:$0xf]
  %v34 = vld [vmem:[%s1 + $0xc] sm:$0xf]
  %v35 = vld [vmem:[%s1 + $0x10] sm:$0xf]
  %v36 = vld [vmem:[%s1 + $0x14] sm:$0xf]
  %v37 = vld [vmem:[%s1 + $0x18] sm:$0xf]
  %v38 = vld [vmem:[%s1 + $0x1c] sm:$0xf]
  %v39 = vld [vmem:[%s2] sm:$0x1]
  %v41 = vlaneseq
  %v42 = vshrl.u32 %v41, 7
  %v43 = vsub.s32 0, %v42
  %v44 = vrot.slane %v39, %v43
  %v48 = vunpack.c.l.b16 %v29
  %v49 = vunpack.c.l.b16 %v30
  %v50 = vpack.c.b16 %v49, %v48
  %v59 = vunpack.c.l.b16 %v31
  %v60 = vunpack.c.l.b16 %v32
  %v61 = vunpack.c.l.b16 %v33
  %v62 = vunpack.c.l.b16 %v34
  %v63 = vunpack.c.l.b16 %v35
  %v64 = vunpack.c.l.b16 %v36
  %v65 = vunpack.c.l.b16 %v37
  %v66 = vunpack.c.l.b16 %v38
  %v67 = vpack.c.b16 %v60, %v59
  %v68 = vpack.c.b16 %v62, %v61
  %v69 = vpack.c.b16 %v64, %v63
  %v70 = vpack.c.b16 %v66, %v65
  %vm75 = vcmask 523264
  %v77 = vsel %vm75, %v50, 0
  %79 = vmatprep.subr.bf16.mxu0 0
  %80 = vmatpush1.bf16.msra.mxu0 0
  %81 = vmatprep.subr.bf16.mxu0 0
  %82 = vmatpush1.bf16.msra.mxu0 0
  %83 = vmatprep.subr.bf16.mxu0 0
  %84 = vmatpush1.bf16.msra.mxu0 0
  %85 = vmatprep.subr.bf16.mxu0 0
  %86 = vmatpush1.bf16.msra.mxu0 0
  %87 = vmatprep.subr.bf16.mxu0 0
  %88 = vmatpush1.bf16.msra.mxu0 %v70
  %89 = vmatprep.subr.bf16.mxu0 0
  %90 = vmatpush1.bf16.msra.mxu0 %v69
  %91 = vmatprep.subr.bf16.mxu0 0
  %92 = vmatpush1.bf16.msra.mxu0 %v68
  %93 = vmatprep.subr.bf16.mxu0 0
  %94 = vmatpush1.bf16.msra.mxu0 %v67
  %95 = vmatprep.subr.bf16.mxu0 0
  %96 = vmatpush2.bf16.msra.mxu0 0
  %97 = vmatprep.subr.bf16.mxu0 0
  %98 = vmatpush2.bf16.msra.mxu0 0
  %99 = vmatprep.subr.bf16.mxu0 0
  %100 = vmatpush2.bf16.msra.mxu0 0
  %101 = vmatprep.subr.bf16.mxu0 0
  %102 = vmatpush2.bf16.msra.mxu0 0
  %103 = vmatprep.subr.bf16.mxu0 0
  %104 = vmatpush2.bf16.msra.mxu0 0
  %105 = vmatprep.subr.bf16.mxu0 0
  %106 = vmatpush2.bf16.msra.mxu0 0
  %107 = vmatprep.subr.bf16.mxu0 0
  %108 = vmatpush2.bf16.msra.mxu0 0
  %109 = vmatprep.subr.bf16.mxu0 0
  %110 = vmatpush2.bf16.msra.mxu0 0
  %111 = vmatprep.mubr.bf16.mxu0 0
  %112 = vmatmul.mubr.bf16.gmra.mxu0 %v77
  %v113 = vpop.f32.mrf.mxu0
  %v114 = vadd.f32 %v44, %v113
  %v115 = vpop.f32.mrf.mxu0
  %v116 = vpop.f32.mrf.mxu0
  %v117 = vadd.f32 %v44, %v116
  %v118 = vpop.f32.mrf.mxu0
  %119 = vdwg.mxu0
  %v120 = vmax.f32 %v114, 0.0
  %v121 = vmax.f32 %v117, 0.0
  %v122 = vpack.c.bf16 %v121, %v120
  %v123 = vld [vmem:[%s3] sm:$0xf]
  %v124 = vld [vmem:[%s3 + $0x4] sm:$0xf]
  %v125 = vld [vmem:[%s3 + $0x8] sm:$0xf]
  %v126 = vld [vmem:[%s3 + $0xc] sm:$0xf]
  %v127 = vld [vmem:[%s3 + $0x10] sm:$0xf]
  %v128 = vld [vmem:[%s3 + $0x14] sm:$0xf]
  %v129 = vld [vmem:[%s3 + $0x18] sm:$0xf]
  %v130 = vld [vmem:[%s3 + $0x1c] sm:$0xf]
  %v131 = vld [vmem:[%s3 + $0x20] sm:$0xf]
  %v132 = vld [vmem:[%s3 + $0x24] sm:$0xf]
  %v133 = vld [vmem:[%s3 + $0x28] sm:$0xf]
  %v134 = vld [vmem:[%s3 + $0x2c] sm:$0xf]
  %v135 = vld [vmem:[%s3 + $0x30] sm:$0xf]
  %v136 = vld [vmem:[%s3 + $0x34] sm:$0xf]
  %v137 = vld [vmem:[%s3 + $0x38] sm:$0xf]
  %v138 = vld [vmem:[%s3 + $0x3c] sm:$0xf]
  %v139 = vld [vmem:[%s4] sm:$0x1]
  %v141 = vlaneseq
  %v142 = vshrl.u32 %v141, 7
  %v143 = vsub.s32 0, %v142
  %v144 = vrot.slane %v139, %v143
  %v162 = vunpack.c.l.b16 %v123
  %v163 = vunpack.c.l.b16 %v124
  %v164 = vunpack.c.l.b16 %v125
  %v165 = vunpack.c.l.b16 %v126
  %v166 = vunpack.c.l.b16 %v127
  %v167 = vunpack.c.l.b16 %v128
  %v168 = vunpack.c.l.b16 %v129
  %v169 = vunpack.c.l.b16 %v130
  %v170 = vunpack.c.l.b16 %v131
  %v171 = vunpack.c.l.b16 %v132
  %v172 = vunpack.c.l.b16 %v133
  %v173 = vunpack.c.l.b16 %v134
  %v174 = vunpack.c.l.b16 %v135
  %v175 = vunpack.c.l.b16 %v136
  %v176 = vunpack.c.l.b16 %v137
  %v177 = vunpack.c.l.b16 %v138
  %v178 = vpack.c.b16 %v163, %v162
  %v179 = vpack.c.b16 %v165, %v164
  %v180 = vpack.c.b16 %v167, %v166
  %v181 = vpack.c.b16 %v169, %v168
  %v182 = vpack.c.b16 %v171, %v170
  %v183 = vpack.c.b16 %v173, %v172
  %v184 = vpack.c.b16 %v175, %v174
  %v185 = vpack.c.b16 %v177, %v176
  %194 = vmatprep.subr.bf16.mxu0 0
  %195 = vmatpush1.bf16.msra.mxu0 %v185
  %196 = vmatprep.subr.bf16.mxu0 0
  %197 = vmatpush1.bf16.msra.mxu0 %v184
  %198 = vmatprep.subr.bf16.mxu0 0
  %199 = vmatpush1.bf16.msra.mxu0 %v183
  %200 = vmatprep.subr.bf16.mxu0 0
  %201 = vmatpush1.bf16.msra.mxu0 %v182
  %202 = vmatprep.subr.bf16.mxu0 0
  %203 = vmatpush1.bf16.msra.mxu0 %v181
  %204 = vmatprep.subr.bf16.mxu0 0
  %205 = vmatpush1.bf16.msra.mxu0 %v180
  %206 = vmatprep.subr.bf16.mxu0 0
  %207 = vmatpush1.bf16.msra.mxu0 %v179
  %208 = vmatprep.subr.bf16.mxu0 0
  %209 = vmatpush1.bf16.msra.mxu0 %v178
  %210 = vmatprep.subr.bf16.mxu0 0
  %211 = vmatpush2.bf16.msra.mxu0 0
  %212 = vmatprep.subr.bf16.mxu0 0
  %213 = vmatpush2.bf16.msra.mxu0 0
  %214 = vmatprep.subr.bf16.mxu0 0
  %215 = vmatpush2.bf16.msra.mxu0 0
  %216 = vmatprep.subr.bf16.mxu0 0
  %217 = vmatpush2.bf16.msra.mxu0 0
  %218 = vmatprep.subr.bf16.mxu0 0
  %219 = vmatpush2.bf16.msra.mxu0 0
  %220 = vmatprep.subr.bf16.mxu0 0
  %221 = vmatpush2.bf16.msra.mxu0 0
  %222 = vmatprep.subr.bf16.mxu0 0
  %223 = vmatpush2.bf16.msra.mxu0 0
  %224 = vmatprep.subr.bf16.mxu0 0
  %225 = vmatpush2.bf16.msra.mxu0 0
  %226 = vmatprep.mubr.bf16.mxu0 0
  %227 = vmatmul.mubr.bf16.gmra.mxu0 %v122
  %v228 = vpop.f32.mrf.mxu0
  %v229 = vadd.f32 %v144, %v228
  %v230 = vpop.f32.mrf.mxu0
  %v231 = vpop.f32.mrf.mxu0
  %v232 = vadd.f32 %v144, %v231
  %v233 = vpop.f32.mrf.mxu0
  %234 = vdwg.mxu0
  %v235 = vmax.f32 %v229, 0.0
  %v236 = vmax.f32 %v232, 0.0
  %v237 = vpack.c.bf16 %v236, %v235
  %v239 = vunpack.c.l.b16 %v237
  %v240 = vunpack.c.h.b16 %v237
  %v241 = vpack.c.b16 %v239, %v239
  %v242 = vpack.c.b16 %v240, %v240
  %245 = vst [vmem:[%s7] sm:$0xf] %v241
  %246 = vst [vmem:[%s7 + $0x4] sm:$0xf] %v242
  %v247 = vld [vmem:[%s5] sm:$0xf]
  %v248 = vld [vmem:[%s5 + $0x4] sm:$0xf]
  %v249 = vld [vmem:[%s5 + $0x8] sm:$0xf]
  %v250 = vld [vmem:[%s5 + $0xc] sm:$0xf]
  %v251 = vld [vmem:[%s5 + $0x10] sm:$0xf]
  %v252 = vld [vmem:[%s5 + $0x14] sm:$0xf]
  %v253 = vld [vmem:[%s5 + $0x18] sm:$0xf]
  %v254 = vld [vmem:[%s5 + $0x1c] sm:$0xf]
  %v255 = vld [vmem:[%s5 + $0x20] sm:$0xf]
  %v256 = vld [vmem:[%s5 + $0x24] sm:$0xf]
  %v257 = vld [vmem:[%s5 + $0x28] sm:$0xf]
  %v258 = vld [vmem:[%s5 + $0x2c] sm:$0xf]
  %v259 = vld [vmem:[%s5 + $0x30] sm:$0xf]
  %v260 = vld [vmem:[%s5 + $0x34] sm:$0xf]
  %v261 = vld [vmem:[%s5 + $0x38] sm:$0xf]
  %v262 = vld [vmem:[%s5 + $0x3c] sm:$0xf]
  %v263 = vld [vmem:[%s6] sm:$0x1]
  %v265 = vlaneseq
  %v266 = vshrl.u32 %v265, 7
  %v267 = vsub.s32 0, %v266
  %v268 = vrot.slane %v263, %v267
  %v286 = vunpack.c.l.b16 %v247
  %v287 = vunpack.c.l.b16 %v248
  %v288 = vunpack.c.l.b16 %v249
  %v289 = vunpack.c.l.b16 %v250
  %v290 = vunpack.c.l.b16 %v251
  %v291 = vunpack.c.l.b16 %v252
  %v292 = vunpack.c.l.b16 %v253
  %v293 = vunpack.c.l.b16 %v254
  %v294 = vunpack.c.l.b16 %v255
  %v295 = vunpack.c.l.b16 %v256
  %v296 = vunpack.c.l.b16 %v257
  %v297 = vunpack.c.l.b16 %v258
  %v298 = vunpack.c.l.b16 %v259
  %v299 = vunpack.c.l.b16 %v260
  %v300 = vunpack.c.l.b16 %v261
  %v301 = vunpack.c.l.b16 %v262
  %v302 = vpack.c.b16 %v287, %v286
  %v303 = vpack.c.b16 %v289, %v288
  %v304 = vpack.c.b16 %v291, %v290
  %v305 = vpack.c.b16 %v293, %v292
  %v306 = vpack.c.b16 %v295, %v294
  %v307 = vpack.c.b16 %v297, %v296
  %v308 = vpack.c.b16 %v299, %v298
  %v309 = vpack.c.b16 %v301, %v300
  %318 = vmatprep.subr.bf16.mxu0 0
  %319 = vmatpush1.bf16.msra.mxu0 %v309
  %320 = vmatprep.subr.bf16.mxu0 0
  %321 = vmatpush1.bf16.msra.mxu0 %v308
  %322 = vmatprep.subr.bf16.mxu0 0
  %323 = vmatpush1.bf16.msra.mxu0 %v307
  %324 = vmatprep.subr.bf16.mxu0 0
  %325 = vmatpush1.bf16.msra.mxu0 %v306
  %326 = vmatprep.subr.bf16.mxu0 0
  %327 = vmatpush1.bf16.msra.mxu0 %v305
  %328 = vmatprep.subr.bf16.mxu0 0
  %329 = vmatpush1.bf16.msra.mxu0 %v304
  %330 = vmatprep.subr.bf16.mxu0 0
  %331 = vmatpush1.bf16.msra.mxu0 %v303
  %332 = vmatprep.subr.bf16.mxu0 0
  %333 = vmatpush1.bf16.msra.mxu0 %v302
  %334 = vmatprep.subr.bf16.mxu0 0
  %335 = vmatpush2.bf16.msra.mxu0 0
  %336 = vmatprep.subr.bf16.mxu0 0
  %337 = vmatpush2.bf16.msra.mxu0 0
  %338 = vmatprep.subr.bf16.mxu0 0
  %339 = vmatpush2.bf16.msra.mxu0 0
  %340 = vmatprep.subr.bf16.mxu0 0
  %341 = vmatpush2.bf16.msra.mxu0 0
  %342 = vmatprep.subr.bf16.mxu0 0
  %343 = vmatpush2.bf16.msra.mxu0 0
  %344 = vmatprep.subr.bf16.mxu0 0
  %345 = vmatpush2.bf16.msra.mxu0 0
  %346 = vmatprep.subr.bf16.mxu0 0
  %347 = vmatpush2.bf16.msra.mxu0 0
  %348 = vmatprep.subr.bf16.mxu0 0
  %349 = vmatpush2.bf16.msra.mxu0 0
  %350 = vmatprep.mubr.bf16.mxu0 0
  %351 = vmatmul.mubr.bf16.gmra.mxu0 %v237
  %v352 = vpop.f32.mrf.mxu0
  %v353 = vadd.f32 %v268, %v352
  %v354 = vpop.f32.mrf.mxu0
  %v355 = vpop.f32.mrf.mxu0
  %v356 = vadd.f32 %v268, %v355
  %v357 = vpop.f32.mrf.mxu0
  %358 = vdwg.mxu0
  %v359 = vpack.c.bf16 %v356, %v353
  %v361 = vunpack.c.l.b16 %v359
  %v362 = vunpack.c.h.b16 %v359
  %v363 = vpack.c.b16 %v361, %v361
  %v364 = vpack.c.b16 %v362, %v362
  %367 = vst [vmem:[%s8] sm:$0xf] %v363
  %368 = vst [vmem:[%s8 + $0x4] sm:$0xf] %v364
  // Predicated region
  $region30: #{roi_box_head_forward.1} parent=0 // pred_check
    _
  $region31: #{roi_box_head_forward.1} parent=0 // pred_check_branch
    %370 = sbr.rel (0) target = $region33
  $region32: #{roi_box_head_forward.1} parent=0 // pred_region
    _
  $region33: #{roi_box_head_forward.1} parent=0 // pred_fallthru
    _
  // Predicated region
  $region34: #{roi_box_head_forward.1} parent=0 // pred_check
    _
  $region35: #{roi_box_head_forward.1} parent=0 // pred_check_branch
    %372 = sbr.rel (0) target = $region37
  $region36: #{roi_box_head_forward.1} parent=0 // pred_region
    _
  $region37: #{roi_box_head_forward.1} parent=0 // pred_fallthru
    _
  // Predicated region
  $region38: #{roi_box_head_forward.1} parent=0 // pred_check
    _
  $region39: #{roi_box_head_forward.1} parent=0 // pred_check_branch
    %374 = sbr.rel (0) target = $region41
  $region40: #{roi_box_head_forward.1} parent=0 // pred_region
    _
  $region41: #{roi_box_head_forward.1} parent=0 // pred_fallthru
    _
  // Predicated region
  $region42: #{roi_box_head_forward.1} parent=0 // pred_check
    _
  $region43: #{roi_box_head_forward.1} parent=0 // pred_check_branch
    %376 = sbr.rel (0) target = $region45
  $region44: #{roi_box_head_forward.1} parent=0 // pred_region
    _
  $region45: #{roi_box_head_forward.1} parent=0 // pred_fallthru
    _

</llo_original>
